<compile_context>
chip_gen: v5e
topology: v5e:2x2
jax: 0.10.0
libtpu: 0.0.40
codegen_flags: <defaults>
</compile_context>

<pallas_src>
import jax
import jax.numpy as jnp
from jax.experimental import pallas as pl
from jax.experimental.pallas import tpu as pltpu


# ---------------------------------------------------------------------------
# Kernels
# ---------------------------------------------------------------------------

def _svd_pair_kernel(ids_ref, p_t_ref, q_t_ref, out_ref):
    """Pair variant (jid valid).

    ids_ref: (1, 3, TB) int32  rows = [uid, iid, jid], batch on lanes
    p_t_ref: (dim, n_user) f32 VMEM-resident (table stored transposed)
    q_t_ref: (dim, n_item) f32 VMEM-resident
    out_ref: (1, 2, TB) f32    rows = [predi, predj]
    """
    dim, n_user = p_t_ref.shape
    n_item = q_t_ref.shape[1]
    tb = ids_ref.shape[2]

    uid_row = ids_ref[:, 0, :]                                  # (1, TB)
    iid_row = ids_ref[:, 1, :]
    jid_row = ids_ref[:, 2, :]

    # One-hot selectors; exactly one iota per table shape (hoisted/shared).
    iota_u = jax.lax.broadcasted_iota(jnp.int32, (n_user, tb), 0)
    iota_q = jax.lax.broadcasted_iota(jnp.int32, (n_item, 2 * tb), 0)

    onehot_u = (iota_u == uid_row).astype(jnp.float32)          # (n_user, TB)
    ij_row = jnp.concatenate([iid_row, jid_row], axis=1)        # (1, 2*TB)
    onehot_q = (iota_q == ij_row).astype(jnp.float32)           # (n_item, 2*TB)

    # Row gathers on the MXU: table^T @ one-hot. The Q gather is fused for
    # iid and jid -> N = 2*TB (full MXU width at TB >= 128).
    user_t = jnp.dot(p_t_ref[...], onehot_u,
                     preferred_element_type=jnp.float32)        # (dim, TB)
    q_both = jnp.dot(q_t_ref[...], onehot_q,
                     preferred_element_type=jnp.float32)        # (dim, 2*TB)
    qi_t = q_both[:, :tb]
    qj_t = q_both[:, tb:]

    # Sublane reduce -> lane-dense rows of the merged output block.
    out_ref[:, 0, :] = jnp.sum(user_t * qi_t, axis=0, keepdims=True)
    out_ref[:, 1, :] = jnp.sum(user_t * qj_t, axis=0, keepdims=True)


def _svd_single_kernel(ids_ref, p_t_ref, q_t_ref, out_ref):
    """Single variant (jid sentinel == -1): only predi is produced.

    ids_ref: (1, 2, TB) int32  rows = [uid, iid]
    out_ref: (1, TB) f32
    """
    dim, n_user = p_t_ref.shape
    n_item = q_t_ref.shape[1]
    tb = ids_ref.shape[2]

    uid_row = ids_ref[:, 0, :]
    iid_row = ids_ref[:, 1, :]

    iota_u = jax.lax.broadcasted_iota(jnp.int32, (n_user, tb), 0)
    iota_q = jax.lax.broadcasted_iota(jnp.int32, (n_item, tb), 0)
    onehot_u = (iota_u == uid_row).astype(jnp.float32)
    onehot_q = (iota_q == iid_row).astype(jnp.float32)

    user_t = jnp.dot(p_t_ref[...], onehot_u, preferred_element_type=jnp.float32)
    qi_t = jnp.dot(q_t_ref[...], onehot_q, preferred_element_type=jnp.float32)
    out_ref[...] = jnp.sum(user_t * qi_t, axis=0, keepdims=True)


# ---------------------------------------------------------------------------
# Helpers
# ---------------------------------------------------------------------------

def _round_up(x, m):
    return ((x + m - 1) // m) * m


def _cdiv(a, b):
    return -(-a // b)


def _vmem_capacity_bytes():
    try:
        return int(pltpu.get_tpu_info().vmem_capacity_bytes)
    except Exception:
        return 64 * 1024 * 1024          # conservative: v7x physical VMEM


def _choose_tile_b(batch, tile_b, dim, n_user, n_item, vmem_cap):
    """Pick a lane-dense batch tile (multiple of 128) sized against VMEM."""
    tb = max(128, min(_round_up(tile_b, 128), _round_up(batch, 128)))
    # Prefer >= 2 tiles when there is enough work, so v7x's two TensorCores
    # both get a share of the "parallel" batch axis.
    if batch > 128 and _cdiv(batch, tb) < 2:
        tb = max(128, _round_up(_cdiv(batch, 2), 128))

    table_bytes = 4 * dim * (n_user + n_item)

    def per_step_bytes(t):
        onehot = 4 * t * (n_user + 2 * n_item)      # one-hot selectors (f32)
        gathered = 4 * dim * 3 * t                  # gathered rows
        io = 2 * (4 * 3 * t) + 2 * (4 * 2 * t)      # double-buffered ids/outs
        return onehot + gathered + io

    while tb > 128 and table_bytes + per_step_bytes(tb) > vmem_cap // 2:
        tb -= 128
    return tb, table_bytes + per_step_bytes(tb)


def _run_with_fallback(build, *args):
    """Run the Buffered(1)-table variant; if this jax build rejects
    pipeline_mode on resident-table BlockSpecs, fall back to defaults."""
    try:
        out = build(single_buffer_tables=True)(*args)
        jax.block_until_ready(out)
        return out
    except Exception:
        out = build(single_buffer_tables=False)(*args)
        jax.block_until_ready(out)
        return out


# ---------------------------------------------------------------------------
# Wrapper (factory: tables transposed / cast exactly once)
# ---------------------------------------------------------------------------

def make_svd_forward(p_weight, q_weight, *, tile_b=512):
    """Builds forward(uid, iid, jid) -> (predi, predj|None), Pallas-backed.

    Mirrors SVD.forward: predj is None when jid[0] == -1 (host-resolved
    data-dependent branch on concrete inputs, same as the PyTorch control
    flow). Out-of-range ids yield a 0.0 prediction instead of raising.
    """
    n_user, dim = p_weight.shape
    n_item = q_weight.shape[0]

    # Transpose once so gathered rows land batch-on-lanes: (dim, TB).
    p_t = jnp.asarray(p_weight, jnp.float32).T     # (dim, n_user)
    q_t = jnp.asarray(q_weight, jnp.float32).T     # (dim, n_item)

    vmem_cap = _vmem_capacity_bytes()
    table_bytes = 4 * dim * (n_user + n_item)
    # TODO(synk): when resident tables + one-hot intermediates exceed the
    # per-generation VMEM budget, switch to an HBM row-gather path
    # (memory_space=pl.ANY tables + PrefetchScalarGridSpec scalar-prefetched
    # ids + manually double-buffered per-row DMA).
    if table_bytes > vmem_cap // 2:
        raise NotImplementedError(
            "embedding tables too large for the VMEM-resident Pallas path")

    def _specs(tb, n_id_rows, single_buffer_tables):
        tkw = {"pipeline_mode": pl.Buffered(1)} if single_buffer_tables else {}
        id_spec = pl.BlockSpec((1, n_id_rows, tb), lambda i: (i, 0, 0))
        p_spec = pl.BlockSpec((dim, n_user), lambda i: (0, 0), **tkw)
        q_spec = pl.BlockSpec((dim, n_item), lambda i: (0, 0), **tkw)
        return id_spec, p_spec, q_spec

    def _cost(num_tiles, tb, pair):
        n_q_cols = 2 if pair else 1
        flops = (2 * dim * tb * num_tiles * (n_user + n_q_cols * n_item)
                 + (1 + n_q_cols) * 2 * dim * tb * num_tiles)
        ids_bytes = num_tiles * (n_q_cols + 1) * tb * 4
        out_bytes = num_tiles * n_q_cols * tb * 4
        bytes_accessed = table_bytes + ids_bytes + out_bytes
        return pl.CostEstimate(flops=int(flops), transcendentals=0,
                               bytes_accessed=int(bytes_accessed))

    def _pad_pack(id_arrays, num_tiles, tb):
        cols = []
        for x in id_arrays:
            x = jnp.asarray(x, jnp.int32)
            x = jnp.pad(x, (0, num_tiles * tb - x.shape[0]))
            cols.append(x.reshape(num_tiles, 1, tb))
        return jnp.concatenate(cols, axis=1)         # (num_tiles, n_ids, tb)

    def forward(uid, iid, jid):
        batch = uid.shape[0]
        tb, footprint = _choose_tile_b(batch, tile_b, dim, n_user, n_item,
                                       vmem_cap)
        num_tiles = _cdiv(batch, tb)
        b_pad = num_tiles * tb
        vmem_limit = int(min(vmem_cap, max(2 * footprint, 16 * 1024 * 1024)))
        cparams = pltpu.CompilerParams(
            dimension_semantics=("parallel",),
            vmem_limit_bytes=vmem_limit)

        # Host-resolved data-dependent branch (forces a device sync on
        # jid[0], same semantics as the PyTorch module; not jit-traceable).
        if int(jid[0]) != -1:
            # Clamp stray negative ids; only jid[0] gates the branch.
            ids = _pad_pack(
                [uid, iid, jnp.maximum(jnp.asarray(jid, jnp.int32), 0)],
                num_tiles, tb)

            def build(single_buffer_tables):
                id_spec, p_spec, q_spec = _specs(tb, 3, single_buffer_tables)
                return pl.pallas_call(
                    _svd_pair_kernel,
                    out_shape=jax.ShapeDtypeStruct((num_tiles, 2, tb),
                                                   jnp.float32),
                    grid=(num_tiles,),
                    in_specs=[id_spec, p_spec, q_spec],
                    out_specs=pl.BlockSpec((1, 2, tb), lambda i: (i, 0, 0)),
                    compiler_params=cparams,
                    cost_estimate=_cost(num_tiles, tb, pair=True),
                )

            out = _run_with_fallback(build, ids, p_t, q_t)   # (nt, 2, tb)
            out = jnp.swapaxes(out, 0, 1).reshape(2, b_pad)[:, :batch]
            return out[0], out[1]

        ids = _pad_pack([uid, iid], num_tiles, tb)

        def build(single_buffer_tables):
            id_spec, p_spec, q_spec = _specs(tb, 2, single_buffer_tables)
            return pl.pallas_call(
                _svd_single_kernel,
                out_shape=jax.ShapeDtypeStruct((num_tiles, tb), jnp.float32),
                grid=(num_tiles,),
                in_specs=[id_spec, p_spec, q_spec],
                out_specs=pl.BlockSpec((1, tb), lambda i: (i, 0)),
                compiler_params=cparams,
                cost_estimate=_cost(num_tiles, tb, pair=False),
            )

        predi = _run_with_fallback(build, ids, p_t, q_t)
        return predi.reshape(b_pad)[:batch], None

    return forward


# ---------------------------------------------------------------------------
# Reference + test
# ---------------------------------------------------------------------------

def _reference(p_weight, q_weight, uid, iid, jid):
    user = p_weight[uid]
    predi = jnp.sum(user * q_weight[iid], axis=1)
    predj = jnp.sum(user * q_weight[jnp.maximum(jid, 0)], axis=1)
    return predi, predj


if __name__ == "__main__":
    n_user, n_item, dim, B = 16, 16, 32, 8

    key = jax.random.PRNGKey(0)
    kp, kq, ku, ki, kj = jax.random.split(key, 5)

    # nn.init.normal_(std=0.01) equivalent, deterministic.
    p_weight = (0.01 * jax.random.normal(kp, (n_user, dim))).astype(jnp.float32)
    q_weight = (0.01 * jax.random.normal(kq, (n_item, dim))).astype(jnp.float32)

    uid = jax.random.randint(ku, (B,), 0, n_user, dtype=jnp.int32)
    iid = jax.random.randint(ki, (B,), 0, n_item, dtype=jnp.int32)
    jid = jax.random.randint(kj, (B,), 0, n_item, dtype=jnp.int32)

    svd_fwd = make_svd_forward(p_weight, q_weight)

    # Branch 1: jid valid -> (predi, predj)
    predi, predj = svd_fwd(uid, iid, jid)
    jax.block_until_ready((predi, predj))
    ref_i, ref_j = _reference(p_weight, q_weight, uid, iid, jid)
    assert jnp.allclose(predi, ref_i, atol=1e-6, rtol=1e-5)
    assert jnp.allclose(predj, ref_j, atol=1e-6, rtol=1e-5)

    # Branch 2: jid[0] == -1 -> predj is None (matches PyTorch semantics)
    jid_neg = jid.at[0].set(-1)
    predi2, predj2 = svd_fwd(uid, iid, jid_neg)
    jax.block_until_ready(predi2)
    assert predj2 is None
    assert jnp.allclose(predi2, ref_i, atol=1e-6, rtol=1e-5)

    # Multi-tile path (exercises >=2 grid steps and the tile-split heuristic).
    B2 = 300
    ku2, ki2, kj2 = jax.random.split(jax.random.PRNGKey(1), 3)
    uid2 = jax.random.randint(ku2, (B2,), 0, n_user, dtype=jnp.int32)
    iid2 = jax.random.randint(ki2, (B2,), 0, n_item, dtype=jnp.int32)
    jid2 = jax.random.randint(kj2, (B2,), 0, n_item, dtype=jnp.int32)
    pi3, pj3 = svd_fwd(uid2, iid2, jid2)
    jax.block_until_ready((pi3, pj3))
    ri3, rj3 = _reference(p_weight, q_weight, uid2, iid2, jid2)
    assert jnp.allclose(pi3, ri3, atol=1e-6, rtol=1e-5)
    assert jnp.allclose(pj3, rj3, atol=1e-6, rtol=1e-5)

    print("KERNEL_OK")
</pallas_src>

<mosaic_0001>
module attributes {stable_mosaic.version = 11 : i64} {
  func.func @_svd_pair_kernel(%arg0: i32, %arg1: memref<1x3x128xi32, #tpu.memory_space<vmem>>, %arg2: memref<32x16xf32, #tpu.memory_space<vmem>>, %arg3: memref<32x16xf32, #tpu.memory_space<vmem>>, %arg4: memref<1x2x128xf32, #tpu.memory_space<vmem>>) attributes {dimension_semantics = [#tpu.dimension_semantics<parallel>], iteration_bounds = array<i64: 1>, scalar_prefetch = 0 : i64, scratch_operands = 0 : i64, tpu.core_type = #tpu.core_type<tc>, window_params = [{transform_indices = @transform_0, window_bounds = array<i64: 1, 3, 128>}, {pipeline_mode = #tpu.pipeline_mode<synchronous>, transform_indices = @transform_1, window_bounds = array<i64: 32, 16>}, {pipeline_mode = #tpu.pipeline_mode<synchronous>, transform_indices = @transform_2, window_bounds = array<i64: 32, 16>}, {transform_indices = @transform_3, window_bounds = array<i64: 1, 2, 128>}]} {
    %c0 = arith.constant 0 : index
    %c0_0 = arith.constant 0 : index
    %c0_1 = arith.constant 0 : index
    %0 = vector.load %arg1[%c0, %c0_0, %c0_1] : memref<1x3x128xi32, #tpu.memory_space<vmem>>, vector<1x1x128xi32>
    %1 = vector.shape_cast %0 : vector<1x1x128xi32> to vector<1x128xi32>
    %c0_2 = arith.constant 0 : index
    %c1 = arith.constant 1 : index
    %c0_3 = arith.constant 0 : index
    %2 = vector.load %arg1[%c0_2, %c1, %c0_3] : memref<1x3x128xi32, #tpu.memory_space<vmem>>, vector<1x1x128xi32>
    %3 = vector.shape_cast %2 : vector<1x1x128xi32> to vector<1x128xi32>
    %c0_4 = arith.constant 0 : index
    %c2 = arith.constant 2 : index
    %c0_5 = arith.constant 0 : index
    %4 = vector.load %arg1[%c0_4, %c2, %c0_5] : memref<1x3x128xi32, #tpu.memory_space<vmem>>, vector<1x1x128xi32>
    %5 = vector.shape_cast %4 : vector<1x1x128xi32> to vector<1x128xi32>
    %6 = tpu.iota {dimensions = array<i32: 0>} : vector<16x128xi32>
    %7 = tpu.iota {dimensions = array<i32: 0>} : vector<16x256xi32>
    %8 = vector.broadcast %1 : vector<1x128xi32> to vector<16x128xi32>
    %9 = arith.cmpi eq, %6, %8 : vector<16x128xi32>
    %10 = arith.extui %9 : vector<16x128xi1> to vector<16x128xi32>
    %11 = arith.sitofp %10 : vector<16x128xi32> to vector<16x128xf32>
    %12 = tpu.concatenate %3, %5 in 1 : vector<1x128xi32>, vector<1x128xi32> -> vector<1x256xi32>
    %13 = vector.broadcast %12 : vector<1x256xi32> to vector<16x256xi32>
    %14 = arith.cmpi eq, %7, %13 : vector<16x256xi32>
    %15 = arith.extui %14 : vector<16x256xi1> to vector<16x256xi32>
    %16 = arith.sitofp %15 : vector<16x256xi32> to vector<16x256xf32>
    %c0_6 = arith.constant 0 : index
    %c0_7 = arith.constant 0 : index
    %17 = vector.load %arg2[%c0_6, %c0_7] : memref<32x16xf32, #tpu.memory_space<vmem>>, vector<32x16xf32>
    %cst = arith.constant dense<0.000000e+00> : vector<32x128xf32>
    %18 = tpu.matmul %17, %11, %cst {dimension_numbers = #tpu.dot_dimension_numbers<[1], [0], [0], [1], [0, 0, 1, 1], [], []>} : vector<32x16xf32>, vector<16x128xf32>, vector<32x128xf32> -> vector<32x128xf32>
    %c0_8 = arith.constant 0 : index
    %c0_9 = arith.constant 0 : index
    %19 = vector.load %arg3[%c0_8, %c0_9] : memref<32x16xf32, #tpu.memory_space<vmem>>, vector<32x16xf32>
    %cst_10 = arith.constant dense<0.000000e+00> : vector<32x256xf32>
    %20 = tpu.matmul %19, %16, %cst_10 {dimension_numbers = #tpu.dot_dimension_numbers<[1], [0], [0], [1], [0, 0, 1, 1], [], []>} : vector<32x16xf32>, vector<16x256xf32>, vector<32x256xf32> -> vector<32x256xf32>
    %21 = vector.extract_strided_slice %20 {offsets = [0, 0], sizes = [32, 128], strides = [1, 1]} : vector<32x256xf32> to vector<32x128xf32>
    %22 = vector.extract_strided_slice %20 {offsets = [0, 128], sizes = [32, 128], strides = [1, 1]} : vector<32x256xf32> to vector<32x128xf32>
    %23 = arith.mulf %18, %21 : vector<32x128xf32>
    %cst_11 = arith.constant dense<0.000000e+00> : vector<128xf32>
    %24 = vector.multi_reduction <add>, %23, %cst_11 [0] : vector<32x128xf32> to vector<128xf32>
    %25 = vector.shape_cast %24 : vector<128xf32> to vector<1x128xf32>
    %c0_12 = arith.constant 0 : index
    %c0_13 = arith.constant 0 : index
    %c0_14 = arith.constant 0 : index
    %26 = vector.load %arg4[%c0_12, %c0_13, %c0_14] : memref<1x2x128xf32, #tpu.memory_space<vmem>>, vector<1x1x128xf32>
    %27 = vector.shape_cast %26 : vector<1x1x128xf32> to vector<1x128xf32>
    %28 = vector.shape_cast %25 : vector<1x128xf32> to vector<1x1x128xf32>
    tpu.vector_store %arg4[%c0_12, %c0_13, %c0_14], %28 {strides = array<i32>} : memref<1x2x128xf32, #tpu.memory_space<vmem>>, vector<1x1x128xf32>,
    %29 = arith.mulf %18, %22 : vector<32x128xf32>
    %cst_15 = arith.constant dense<0.000000e+00> : vector<128xf32>
    %30 = vector.multi_reduction <add>, %29, %cst_15 [0] : vector<32x128xf32> to vector<128xf32>
    %31 = vector.shape_cast %30 : vector<128xf32> to vector<1x128xf32>
    %c0_16 = arith.constant 0 : index
    %c1_17 = arith.constant 1 : index
    %c0_18 = arith.constant 0 : index
    %32 = vector.load %arg4[%c0_16, %c1_17, %c0_18] : memref<1x2x128xf32, #tpu.memory_space<vmem>>, vector<1x1x128xf32>
    %33 = vector.shape_cast %32 : vector<1x1x128xf32> to vector<1x128xf32>
    %34 = vector.shape_cast %31 : vector<1x128xf32> to vector<1x1x128xf32>
    tpu.vector_store %arg4[%c0_16, %c1_17, %c0_18], %34 {strides = array<i32>} : memref<1x2x128xf32, #tpu.memory_space<vmem>>, vector<1x1x128xf32>,
    return
  }
  func.func @transform_0(%arg0: i32) -> (i32, i32, i32) {
    %c0_i32 = arith.constant 0 : i32
    %c0_i32_0 = arith.constant 0 : i32
    %c0_i32_1 = arith.constant 0 : i32
    return %arg0, %c0_i32, %c0_i32_0 : i32, i32, i32
  }
  func.func @transform_1(%arg0: i32) -> (i32, i32) {
    %c0_i32 = arith.constant 0 : i32
    %c0_i32_0 = arith.constant 0 : i32
    %c0_i32_1 = arith.constant 0 : i32
    return %c0_i32, %c0_i32_0 : i32, i32
  }
  func.func @transform_2(%arg0: i32) -> (i32, i32) {
    %c0_i32 = arith.constant 0 : i32
    %c0_i32_0 = arith.constant 0 : i32
    %c0_i32_1 = arith.constant 0 : i32
    return %c0_i32, %c0_i32_0 : i32, i32
  }
  func.func @transform_3(%arg0: i32) -> (i32, i32, i32) {
    %c0_i32 = arith.constant 0 : i32
    %c0_i32_0 = arith.constant 0 : i32
    %c0_i32_1 = arith.constant 0 : i32
    return %arg0, %c0_i32, %c0_i32_0 : i32, i32, i32
  }
}

module attributes {stable_mosaic.version = 11 : i64} {
  func.func @_svd_pair_kernel(%arg0: i32, %arg1: memref<1x3x128xi32, #tpu.memory_space<vmem>>, %arg2: memref<32x16xf32, #tpu.memory_space<vmem>>, %arg3: memref<32x16xf32, #tpu.memory_space<vmem>>, %arg4: memref<1x2x128xf32, #tpu.memory_space<vmem>>) attributes {dimension_semantics = [#tpu.dimension_semantics<parallel>], iteration_bounds = array<i64: 1>, scalar_prefetch = 0 : i64, scratch_operands = 0 : i64, tpu.core_type = #tpu.core_type<tc>, window_params = [{transform_indices = @transform_0, window_bounds = array<i64: 1, 3, 128>}, {pipeline_mode = #tpu.pipeline_mode<synchronous>, transform_indices = @transform_1, window_bounds = array<i64: 32, 16>}, {pipeline_mode = #tpu.pipeline_mode<synchronous>, transform_indices = @transform_2, window_bounds = array<i64: 32, 16>}, {transform_indices = @transform_3, window_bounds = array<i64: 1, 2, 128>}]} {
    %c0 = arith.constant 0 : index
    %c0_0 = arith.constant 0 : index
    %c0_1 = arith.constant 0 : index
    %0 = vector.load %arg1[%c0, %c0_0, %c0_1] : memref<1x3x128xi32, #tpu.memory_space<vmem>>, vector<1x1x128xi32>
    %1 = vector.shape_cast %0 : vector<1x1x128xi32> to vector<1x128xi32>
    %c0_2 = arith.constant 0 : index
    %c1 = arith.constant 1 : index
    %c0_3 = arith.constant 0 : index
    %2 = vector.load %arg1[%c0_2, %c1, %c0_3] : memref<1x3x128xi32, #tpu.memory_space<vmem>>, vector<1x1x128xi32>
    %3 = vector.shape_cast %2 : vector<1x1x128xi32> to vector<1x128xi32>
    %c0_4 = arith.constant 0 : index
    %c2 = arith.constant 2 : index
    %c0_5 = arith.constant 0 : index
    %4 = vector.load %arg1[%c0_4, %c2, %c0_5] : memref<1x3x128xi32, #tpu.memory_space<vmem>>, vector<1x1x128xi32>
    %5 = vector.shape_cast %4 : vector<1x1x128xi32> to vector<1x128xi32>
    %6 = tpu.iota {dimensions = array<i32: 0>} : vector<16x128xi32>
    %7 = tpu.iota {dimensions = array<i32: 0>} : vector<16x256xi32>
    %8 = vector.broadcast %1 : vector<1x128xi32> to vector<16x128xi32>
    %9 = arith.cmpi eq, %6, %8 : vector<16x128xi32>
    %10 = arith.extui %9 : vector<16x128xi1> to vector<16x128xi32>
    %11 = arith.sitofp %10 : vector<16x128xi32> to vector<16x128xf32>
    %12 = tpu.concatenate %3, %5 in 1 : vector<1x128xi32>, vector<1x128xi32> -> vector<1x256xi32>
    %13 = vector.broadcast %12 : vector<1x256xi32> to vector<16x256xi32>
    %14 = arith.cmpi eq, %7, %13 : vector<16x256xi32>
    %15 = arith.extui %14 : vector<16x256xi1> to vector<16x256xi32>
    %16 = arith.sitofp %15 : vector<16x256xi32> to vector<16x256xf32>
    %c0_6 = arith.constant 0 : index
    %c0_7 = arith.constant 0 : index
    %17 = vector.load %arg2[%c0_6, %c0_7] : memref<32x16xf32, #tpu.memory_space<vmem>>, vector<32x16xf32>
    %cst = arith.constant dense<0.000000e+00> : vector<32x128xf32>
    %18 = tpu.matmul %17, %11, %cst {dimension_numbers = #tpu.dot_dimension_numbers<[1], [0], [0], [1], [0, 0, 1, 1], [], []>} : vector<32x16xf32>, vector<16x128xf32>, vector<32x128xf32> -> vector<32x128xf32>
    %c0_8 = arith.constant 0 : index
    %c0_9 = arith.constant 0 : index
    %19 = vector.load %arg3[%c0_8, %c0_9] : memref<32x16xf32, #tpu.memory_space<vmem>>, vector<32x16xf32>
    %cst_10 = arith.constant dense<0.000000e+00> : vector<32x256xf32>
    %20 = tpu.matmul %19, %16, %cst_10 {dimension_numbers = #tpu.dot_dimension_numbers<[1], [0], [0], [1], [0, 0, 1, 1], [], []>} : vector<32x16xf32>, vector<16x256xf32>, vector<32x256xf32> -> vector<32x256xf32>
    %21 = vector.extract_strided_slice %20 {offsets = [0, 0], sizes = [32, 128], strides = [1, 1]} : vector<32x256xf32> to vector<32x128xf32>
    %22 = vector.extract_strided_slice %20 {offsets = [0, 128], sizes = [32, 128], strides = [1, 1]} : vector<32x256xf32> to vector<32x128xf32>
    %23 = arith.mulf %18, %21 : vector<32x128xf32>
    %cst_11 = arith.constant dense<0.000000e+00> : vector<128xf32>
    %24 = vector.multi_reduction <add>, %23, %cst_11 [0] : vector<32x128xf32> to vector<128xf32>
    %25 = vector.shape_cast %24 : vector<128xf32> to vector<1x128xf32>
    %c0_12 = arith.constant 0 : index
    %c0_13 = arith.constant 0 : index
    %c0_14 = arith.constant 0 : index
    %26 = vector.load %arg4[%c0_12, %c0_13, %c0_14] : memref<1x2x128xf32, #tpu.memory_space<vmem>>, vector<1x1x128xf32>
    %27 = vector.shape_cast %26 : vector<1x1x128xf32> to vector<1x128xf32>
    %28 = vector.shape_cast %25 : vector<1x128xf32> to vector<1x1x128xf32>
    tpu.vector_store %arg4[%c0_12, %c0_13, %c0_14], %28 {strides = array<i32>} : memref<1x2x128xf32, #tpu.memory_space<vmem>>, vector<1x1x128xf32>,
    %29 = arith.mulf %18, %22 : vector<32x128xf32>
    %cst_15 = arith.constant dense<0.000000e+00> : vector<128xf32>
    %30 = vector.multi_reduction <add>, %29, %cst_15 [0] : vector<32x128xf32> to vector<128xf32>
    %31 = vector.shape_cast %30 : vector<128xf32> to vector<1x128xf32>
    %c0_16 = arith.constant 0 : index
    %c1_17 = arith.constant 1 : index
    %c0_18 = arith.constant 0 : index
    %32 = vector.load %arg4[%c0_16, %c1_17, %c0_18] : memref<1x2x128xf32, #tpu.memory_space<vmem>>, vector<1x1x128xf32>
    %33 = vector.shape_cast %32 : vector<1x1x128xf32> to vector<1x128xf32>
    %34 = vector.shape_cast %31 : vector<1x128xf32> to vector<1x1x128xf32>
    tpu.vector_store %arg4[%c0_16, %c1_17, %c0_18], %34 {strides = array<i32>} : memref<1x2x128xf32, #tpu.memory_space<vmem>>, vector<1x1x128xf32>,
    return
  }
  func.func @transform_0(%arg0: i32) -> (i32, i32, i32) {
    %c0_i32 = arith.constant 0 : i32
    %c0_i32_0 = arith.constant 0 : i32
    %c0_i32_1 = arith.constant 0 : i32
    return %arg0, %c0_i32, %c0_i32_0 : i32, i32, i32
  }
  func.func @transform_1(%arg0: i32) -> (i32, i32) {
    %c0_i32 = arith.constant 0 : i32
    %c0_i32_0 = arith.constant 0 : i32
    %c0_i32_1 = arith.constant 0 : i32
    return %c0_i32, %c0_i32_0 : i32, i32
  }
  func.func @transform_2(%arg0: i32) -> (i32, i32) {
    %c0_i32 = arith.constant 0 : i32
    %c0_i32_0 = arith.constant 0 : i32
    %c0_i32_1 = arith.constant 0 : i32
    return %c0_i32, %c0_i32_0 : i32, i32
  }
  func.func @transform_3(%arg0: i32) -> (i32, i32, i32) {
    %c0_i32 = arith.constant 0 : i32
    %c0_i32_0 = arith.constant 0 : i32
    %c0_i32_1 = arith.constant 0 : i32
    return %arg0, %c0_i32, %c0_i32_0 : i32, i32, i32
  }
}

</mosaic_0001>

<llo_original>
// kernel: tpu_custom_call.1
$region0: #{tpu_custom_call.1}
  #allocation0 [shape = 'u32[]', space=smem, size = 0x4, offset = 0x4, fixed_abs, tag = 'smem constant byte address 0x4 - core index']
  #allocation1 [shape = 'u32[72,128]{1,0:T(1,128)}', space=vmem, size = 0x9000, scoped, tag = 'internal scratch']
  %s0 = inlined_call_operand.vmem [shape: s32[1,3,128], index: 0, kind: input, shape index: {}]
  %s1 = inlined_call_operand.vmem [shape: f32[32,16], index: 1, kind: input, shape index: {}]
  %s2 = inlined_call_operand.vmem [shape: f32[32,16], index: 2, kind: input, shape index: {}]
  %s3 = inlined_call_operand.hbm [shape: f32[1,2,128], index: 3, kind: output, shape index: {}]
  %s4 = sld [smem:[#allocation0]]
  $region22: #{tpu_custom_call.1} parent=0
    _
  %s6 = ssub.s32 1, %s4
  %s7 = scalar_select 0, %s6, %s4
  $region1: #{tpu_custom_call.1} parent=0
    #allocation2 [shape = 'u8[1024]{0}', space=vmem, size = 0x400, scoped, tag = 'output window, operand 0, single buffered']
    #allocation3 [shape = 's32[1]{0}', space=sflag, size = 0x4, scoped, tag = 'scoped memory for tpu_custom_call.1']
    %8 = vsyncpa [#allocation3], 0
    // Predicated region
    $region2: #{tpu_custom_call.1} parent=1 // pred_check
      _
    $region3: #{tpu_custom_call.1} parent=1 // pred_check_branch
      %10 = sbr.rel (0) target = $region5
    $region4: #{tpu_custom_call.1} parent=1 // pred_region
      _
    $region5: #{tpu_custom_call.1} parent=1 // pred_fallthru
      _
    // Predicated region
    $region6: #{tpu_custom_call.1} parent=1 // pred_check
      _
    $region7: #{tpu_custom_call.1} parent=1 // pred_check_branch
      %12 = sbr.rel (0) target = $region9
    $region8: #{tpu_custom_call.1} parent=1 // pred_region
      _
    $region9: #{tpu_custom_call.1} parent=1 // pred_fallthru
      _
    // Predicated region
    $region10: #{tpu_custom_call.1} parent=1 // pred_check
      _
    $region11: #{tpu_custom_call.1} parent=1 // pred_check_branch
      %14 = sbr.rel (0) target = $region13
    $region12: #{tpu_custom_call.1} parent=1 // pred_region
      _
    $region13: #{tpu_custom_call.1} parent=1 // pred_fallthru
      _
    %v15 = vld [vmem:[%s0] sm:$0x1]
    %v16 = vld [vmem:[%s0 + $0x1] sm:$0x1]
    %v17 = vld [vmem:[%s0 + $0x2] sm:$0x1]
    %v18 = vlaneseq
    %v19 = vshrl.u32 %v18, 7
    %v20 = vadd.s32 %v19, 8
    %v21 = vperm.slane %v15, 0
    %vm22 = vcmp.eq.s32.totalorder %v19, %v21
    %vm23 = vcmp.eq.s32.totalorder %v20, %v21
    %v24 = vsel %vm22, 1, 0
    %v25 = vsel %vm23, 1, 0
    %v26 = vcvt.s32.f32 %v24
    %v27 = vcvt.s32.f32 %v25
    %v28 = vperm.slane %v16, 0
    %v29 = vperm.slane %v17, 0
    %vm30 = vcmp.eq.s32.totalorder %v19, %v28
    %vm31 = vcmp.eq.s32.totalorder %v19, %v29
    %vm32 = vcmp.eq.s32.totalorder %v20, %v28
    %vm33 = vcmp.eq.s32.totalorder %v20, %v29
    %v34 = vsel %vm30, 1, 0
    %v35 = vsel %vm31, 1, 0
    %v36 = vsel %vm32, 1, 0
    %v37 = vsel %vm33, 1, 0
    %v38 = vcvt.s32.f32 %v34
    %v39 = vcvt.s32.f32 %v35
    %v40 = vcvt.s32.f32 %v36
    %v41 = vcvt.s32.f32 %v37
    %v42 = vld [vmem:[%s1] sm:$0xff]
    %v43 = vld [vmem:[%s1 + $0x8] sm:$0xff]
    %v44 = vld [vmem:[%s1 + $0x10] sm:$0xff]
    %v45 = vld [vmem:[%s1 + $0x18] sm:$0xff]
    %vm46 = vcmask 130048
    %v48 = vsel %vm46, %v42, 0
    %v51 = vsel %vm46, %v43, 0
    %v54 = vsel %vm46, %v44, 0
    %v57 = vsel %vm46, %v45, 0
    %59 = vmatpush.msra.mxu0 0.0
    %60 = vmatpush.msra.mxu0 0.0
    %61 = vmatpush.msra.mxu0 0.0
    %62 = vmatpush.msra.mxu0 0.0
    %63 = vmatpush.msra.mxu0 0.0
    %64 = vmatpush.msra.mxu0 0.0
    %65 = vmatpush.msra.mxu0 0.0
    %66 = vmatpush.msra.mxu0 0.0
    %67 = vmatpush.msra.mxu0 0.0
    %68 = vmatpush.msra.mxu0 0.0
    %69 = vmatpush.msra.mxu0 0.0
    %70 = vmatpush.msra.mxu0 0.0
    %71 = vmatpush.msra.mxu0 0.0
    %72 = vmatpush.msra.mxu0 0.0
    %73 = vmatpush.msra.mxu0 %v27
    %74 = vmatpush.msra.mxu0 %v26
    %75 = vmatmul.f32.gmra.mxu0 %v48
    %v76 = vpop.f32.mrf.mxu0
    %v77 = vadd.f32 0.0, %v76
    %78 = vmatmul.f32.gmra.mxu0 %v51
    %v79 = vpop.f32.mrf.mxu0
    %v80 = vadd.f32 0.0, %v79
    %81 = vmatmul.f32.gmra.mxu0 %v54
    %v82 = vpop.f32.mrf.mxu0
    %v83 = vadd.f32 0.0, %v82
    %84 = vmatmul.f32.gmra.mxu0 %v57
    %v85 = vpop.f32.mrf.mxu0
    %v86 = vadd.f32 0.0, %v85
    %87 = vdwg.mxu0
    %v88 = vld [vmem:[%s2] sm:$0xff]
    %v89 = vld [vmem:[%s2 + $0x8] sm:$0xff]
    %v90 = vld [vmem:[%s2 + $0x10] sm:$0xff]
    %v91 = vld [vmem:[%s2 + $0x18] sm:$0xff]
    %v93 = vsel %vm46, %v88, 0
    %v96 = vsel %vm46, %v89, 0
    %v99 = vsel %vm46, %v90, 0
    %v102 = vsel %vm46, %v91, 0
    %104 = vmatpush.msra.mxu0 0.0
    %105 = vmatpush.msra.mxu0 0.0
    %106 = vmatpush.msra.mxu0 0.0
    %107 = vmatpush.msra.mxu0 0.0
    %108 = vmatpush.msra.mxu0 0.0
    %109 = vmatpush.msra.mxu0 0.0
    %110 = vmatpush.msra.mxu0 0.0
    %111 = vmatpush.msra.mxu0 0.0
    %112 = vmatpush.msra.mxu0 0.0
    %113 = vmatpush.msra.mxu0 0.0
    %114 = vmatpush.msra.mxu0 0.0
    %115 = vmatpush.msra.mxu0 0.0
    %116 = vmatpush.msra.mxu0 0.0
    %117 = vmatpush.msra.mxu0 0.0
    %118 = vmatpush.msra.mxu0 %v40
    %119 = vmatpush.msra.mxu0 %v38
    %120 = vmatmul.f32.gmra.mxu0 %v93
    %v121 = vpop.f32.mrf.mxu0
    %v122 = vadd.f32 0.0, %v121
    %123 = vmatmul.f32.gmra.mxu0 %v96
    %v124 = vpop.f32.mrf.mxu0
    %v125 = vadd.f32 0.0, %v124
    %126 = vmatmul.f32.gmra.mxu0 %v99
    %v127 = vpop.f32.mrf.mxu0
    %v128 = vadd.f32 0.0, %v127
    %129 = vmatmul.f32.gmra.mxu0 %v102
    %v130 = vpop.f32.mrf.mxu0
    %v131 = vadd.f32 0.0, %v130
    %132 = vdwg.mxu0
    %133 = vmatpush.msra.mxu0 0.0
    %134 = vmatpush.msra.mxu0 0.0
    %135 = vmatpush.msra.mxu0 0.0
    %136 = vmatpush.msra.mxu0 0.0
    %137 = vmatpush.msra.mxu0 0.0
    %138 = vmatpush.msra.mxu0 0.0
    %139 = vmatpush.msra.mxu0 0.0
    %140 = vmatpush.msra.mxu0 0.0
    %141 = vmatpush.msra.mxu0 0.0
    %142 = vmatpush.msra.mxu0 0.0
    %143 = vmatpush.msra.mxu0 0.0
    %144 = vmatpush.msra.mxu0 0.0
    %145 = vmatpush.msra.mxu0 0.0
    %146 = vmatpush.msra.mxu0 0.0
    %147 = vmatpush.msra.mxu0 %v41
    %148 = vmatpush.msra.mxu0 %v39
    %149 = vmatmul.f32.gmra.mxu0 %v93
    %v150 = vpop.f32.mrf.mxu0
    %v151 = vadd.f32 0.0, %v150
    %152 = vmatmul.f32.gmra.mxu0 %v96
    %v153 = vpop.f32.mrf.mxu0
    %v154 = vadd.f32 0.0, %v153
    %155 = vmatmul.f32.gmra.mxu0 %v99
    %v156 = vpop.f32.mrf.mxu0
    %v157 = vadd.f32 0.0, %v156
    %158 = vmatmul.f32.gmra.mxu0 %v102
    %v159 = vpop.f32.mrf.mxu0
    %v160 = vadd.f32 0.0, %v159
    %161 = vdwg.mxu0
    %v162 = vmul.f32 %v77, %v122
    %v163 = vmul.f32 %v80, %v125
    %v164 = vmul.f32 %v83, %v128
    %v165 = vmul.f32 %v86, %v131
    %v166 = vadd.f32 %v162, %v163
    %v167 = vadd.f32 %v166, %v164
    %v168 = vadd.f32 %v167, %v165
    %v169 = vrot.slane %v168, 4
    %v170 = vadd.f32 %v168, %v169
    %v171 = vrot.slane %v170, 2
    %v172 = vadd.f32 %v170, %v171
    %v173 = vrot.slane %v172, 1
    %v174 = vadd.f32 %v172, %v173
    %175 = vst [vmem:[#allocation2] sm:$0x1] %v174
    %v176 = vmul.f32 %v77, %v151
    %v177 = vmul.f32 %v80, %v154
    %v178 = vmul.f32 %v83, %v157
    %v179 = vmul.f32 %v86, %v160
    %v180 = vadd.f32 %v176, %v177
    %v181 = vadd.f32 %v180, %v178
    %v182 = vadd.f32 %v181, %v179
    %v183 = vrot.slane %v182, 4
    %v184 = vadd.f32 %v182, %v183
    %v185 = vrot.slane %v184, 2
    %v186 = vadd.f32 %v184, %v185
    %v187 = vrot.slane %v186, 1
    %v188 = vadd.f32 %v186, %v187
    %189 = vst [vmem:[#allocation2 + $0x1] sm:$0x1] %v188
    // Predicated region
    $region14: #{tpu_custom_call.1} parent=1 // pred_check
      _
    $region15: #{tpu_custom_call.1} parent=1 // pred_check_branch
      %191 = sbr.rel (0) target = $region17
    $region16: #{tpu_custom_call.1} parent=1 // pred_region
      %193 = vsyncadd [#allocation3], 0
      %s195 = sshll.u32 [#allocation2], 4
      %s196 = int_to_ptr.vmem [resolvable:$true] %s195
      %s197 = sshll.u32 %s3, 4
      %s198 = int_to_ptr.hbm [resolvable:$true] %s197
      %200 = dma.vmem_to_hbm [thread:$0]  %s196, 32, %s198, [#allocation3]
    $region17: #{tpu_custom_call.1} parent=1 // pred_fallthru
      _
    // Predicated region
    $region18: #{tpu_custom_call.1} parent=1 // pred_check
      _
    $region19: #{tpu_custom_call.1} parent=1 // pred_check_branch
      %202 = sbr.rel (0) target = $region21
    $region20: #{tpu_custom_call.1} parent=1 // pred_region
      %204 = dma.done [#allocation3], 32
    $region21: #{tpu_custom_call.1} parent=1 // pred_fallthru
      _
    %205 = vsyncpa [#allocation3], 1

// kernel: tpu_custom_call.1
$region0: #{tpu_custom_call.1}
  #allocation0 [shape = 'u32[]', space=smem, size = 0x4, offset = 0x4, fixed_abs, tag = 'smem constant byte address 0x4 - core index']
  #allocation1 [shape = 'u32[72,128]{1,0:T(1,128)}', space=vmem, size = 0x9000, scoped, tag = 'internal scratch']
  %s0 = inlined_call_operand.vmem [shape: s32[1,3,128], index: 0, kind: input, shape index: {}]
  %s1 = inlined_call_operand.vmem [shape: f32[32,16], index: 1, kind: input, shape index: {}]
  %s2 = inlined_call_operand.vmem [shape: f32[32,16], index: 2, kind: input, shape index: {}]
  %s3 = inlined_call_operand.hbm [shape: f32[1,2,128], index: 3, kind: output, shape index: {}]
  %s4 = sld [smem:[#allocation0]]
  $region22: #{tpu_custom_call.1} parent=0
    _
  %s6 = ssub.s32 1, %s4
  %s7 = scalar_select 0, %s6, %s4
  $region1: #{tpu_custom_call.1} parent=0
    #allocation2 [shape = 'u8[1024]{0}', space=vmem, size = 0x400, scoped, tag = 'output window, operand 0, single buffered']
    #allocation3 [shape = 's32[1]{0}', space=sflag, size = 0x4, scoped, tag = 'scoped memory for tpu_custom_call.1']
    %8 = vsyncpa [#allocation3], 0
    // Predicated region
    $region2: #{tpu_custom_call.1} parent=1 // pred_check
      _
    $region3: #{tpu_custom_call.1} parent=1 // pred_check_branch
      %10 = sbr.rel (0) target = $region5
    $region4: #{tpu_custom_call.1} parent=1 // pred_region
      _
    $region5: #{tpu_custom_call.1} parent=1 // pred_fallthru
      _
    // Predicated region
    $region6: #{tpu_custom_call.1} parent=1 // pred_check
      _
    $region7: #{tpu_custom_call.1} parent=1 // pred_check_branch
      %12 = sbr.rel (0) target = $region9
    $region8: #{tpu_custom_call.1} parent=1 // pred_region
      _
    $region9: #{tpu_custom_call.1} parent=1 // pred_fallthru
      _
    // Predicated region
    $region10: #{tpu_custom_call.1} parent=1 // pred_check
      _
    $region11: #{tpu_custom_call.1} parent=1 // pred_check_branch
      %14 = sbr.rel (0) target = $region13
    $region12: #{tpu_custom_call.1} parent=1 // pred_region
      _
    $region13: #{tpu_custom_call.1} parent=1 // pred_fallthru
      _
    %v15 = vld [vmem:[%s0] sm:$0x1]
    %v16 = vld [vmem:[%s0 + $0x1] sm:$0x1]
    %v17 = vld [vmem:[%s0 + $0x2] sm:$0x1]
    %v18 = vlaneseq
    %v19 = vshrl.u32 %v18, 7
    %v20 = vadd.s32 %v19, 8
    %v21 = vperm.slane %v15, 0
    %vm22 = vcmp.eq.s32.totalorder %v19, %v21
    %vm23 = vcmp.eq.s32.totalorder %v20, %v21
    %v24 = vsel %vm22, 1, 0
    %v25 = vsel %vm23, 1, 0
    %v26 = vcvt.s32.f32 %v24
    %v27 = vcvt.s32.f32 %v25
    %v28 = vperm.slane %v16, 0
    %v29 = vperm.slane %v17, 0
    %vm30 = vcmp.eq.s32.totalorder %v19, %v28
    %vm31 = vcmp.eq.s32.totalorder %v19, %v29
    %vm32 = vcmp.eq.s32.totalorder %v20, %v28
    %vm33 = vcmp.eq.s32.totalorder %v20, %v29
    %v34 = vsel %vm30, 1, 0
    %v35 = vsel %vm31, 1, 0
    %v36 = vsel %vm32, 1, 0
    %v37 = vsel %vm33, 1, 0
    %v38 = vcvt.s32.f32 %v34
    %v39 = vcvt.s32.f32 %v35
    %v40 = vcvt.s32.f32 %v36
    %v41 = vcvt.s32.f32 %v37
    %v42 = vld [vmem:[%s1] sm:$0xff]
    %v43 = vld [vmem:[%s1 + $0x8] sm:$0xff]
    %v44 = vld [vmem:[%s1 + $0x10] sm:$0xff]
    %v45 = vld [vmem:[%s1 + $0x18] sm:$0xff]
    %vm46 = vcmask 130048
    %v48 = vsel %vm46, %v42, 0
    %v51 = vsel %vm46, %v43, 0
    %v54 = vsel %vm46, %v44, 0
    %v57 = vsel %vm46, %v45, 0
    %59 = vmatpush.msra.mxu0 0.0
    %60 = vmatpush.msra.mxu0 0.0
    %61 = vmatpush.msra.mxu0 0.0
    %62 = vmatpush.msra.mxu0 0.0
    %63 = vmatpush.msra.mxu0 0.0
    %64 = vmatpush.msra.mxu0 0.0
    %65 = vmatpush.msra.mxu0 0.0
    %66 = vmatpush.msra.mxu0 0.0
    %67 = vmatpush.msra.mxu0 0.0
    %68 = vmatpush.msra.mxu0 0.0
    %69 = vmatpush.msra.mxu0 0.0
    %70 = vmatpush.msra.mxu0 0.0
    %71 = vmatpush.msra.mxu0 0.0
    %72 = vmatpush.msra.mxu0 0.0
    %73 = vmatpush.msra.mxu0 %v27
    %74 = vmatpush.msra.mxu0 %v26
    %75 = vmatmul.f32.gmra.mxu0 %v48
    %v76 = vpop.f32.mrf.mxu0
    %v77 = vadd.f32 0.0, %v76
    %78 = vmatmul.f32.gmra.mxu0 %v51
    %v79 = vpop.f32.mrf.mxu0
    %v80 = vadd.f32 0.0, %v79
    %81 = vmatmul.f32.gmra.mxu0 %v54
    %v82 = vpop.f32.mrf.mxu0
    %v83 = vadd.f32 0.0, %v82
    %84 = vmatmul.f32.gmra.mxu0 %v57
    %v85 = vpop.f32.mrf.mxu0
    %v86 = vadd.f32 0.0, %v85
    %87 = vdwg.mxu0
    %v88 = vld [vmem:[%s2] sm:$0xff]
    %v89 = vld [vmem:[%s2 + $0x8] sm:$0xff]
    %v90 = vld [vmem:[%s2 + $0x10] sm:$0xff]
    %v91 = vld [vmem:[%s2 + $0x18] sm:$0xff]
    %v93 = vsel %vm46, %v88, 0
    %v96 = vsel %vm46, %v89, 0
    %v99 = vsel %vm46, %v90, 0
    %v102 = vsel %vm46, %v91, 0
    %104 = vmatpush.msra.mxu0 0.0
    %105 = vmatpush.msra.mxu0 0.0
    %106 = vmatpush.msra.mxu0 0.0
    %107 = vmatpush.msra.mxu0 0.0
    %108 = vmatpush.msra.mxu0 0.0
    %109 = vmatpush.msra.mxu0 0.0
    %110 = vmatpush.msra.mxu0 0.0
    %111 = vmatpush.msra.mxu0 0.0
    %112 = vmatpush.msra.mxu0 0.0
    %113 = vmatpush.msra.mxu0 0.0
    %114 = vmatpush.msra.mxu0 0.0
    %115 = vmatpush.msra.mxu0 0.0
    %116 = vmatpush.msra.mxu0 0.0
    %117 = vmatpush.msra.mxu0 0.0
    %118 = vmatpush.msra.mxu0 %v40
    %119 = vmatpush.msra.mxu0 %v38
    %120 = vmatmul.f32.gmra.mxu0 %v93
    %v121 = vpop.f32.mrf.mxu0
    %v122 = vadd.f32 0.0, %v121
    %123 = vmatmul.f32.gmra.mxu0 %v96
    %v124 = vpop.f32.mrf.mxu0
    %v125 = vadd.f32 0.0, %v124
    %126 = vmatmul.f32.gmra.mxu0 %v99
    %v127 = vpop.f32.mrf.mxu0
    %v128 = vadd.f32 0.0, %v127
    %129 = vmatmul.f32.gmra.mxu0 %v102
    %v130 = vpop.f32.mrf.mxu0
    %v131 = vadd.f32 0.0, %v130
    %132 = vdwg.mxu0
    %133 = vmatpush.msra.mxu0 0.0
    %134 = vmatpush.msra.mxu0 0.0
    %135 = vmatpush.msra.mxu0 0.0
    %136 = vmatpush.msra.mxu0 0.0
    %137 = vmatpush.msra.mxu0 0.0
    %138 = vmatpush.msra.mxu0 0.0
    %139 = vmatpush.msra.mxu0 0.0
    %140 = vmatpush.msra.mxu0 0.0
    %141 = vmatpush.msra.mxu0 0.0
    %142 = vmatpush.msra.mxu0 0.0
    %143 = vmatpush.msra.mxu0 0.0
    %144 = vmatpush.msra.mxu0 0.0
    %145 = vmatpush.msra.mxu0 0.0
    %146 = vmatpush.msra.mxu0 0.0
    %147 = vmatpush.msra.mxu0 %v41
    %148 = vmatpush.msra.mxu0 %v39
    %149 = vmatmul.f32.gmra.mxu0 %v93
    %v150 = vpop.f32.mrf.mxu0
    %v151 = vadd.f32 0.0, %v150
    %152 = vmatmul.f32.gmra.mxu0 %v96
    %v153 = vpop.f32.mrf.mxu0
    %v154 = vadd.f32 0.0, %v153
    %155 = vmatmul.f32.gmra.mxu0 %v99
    %v156 = vpop.f32.mrf.mxu0
    %v157 = vadd.f32 0.0, %v156
    %158 = vmatmul.f32.gmra.mxu0 %v102
    %v159 = vpop.f32.mrf.mxu0
    %v160 = vadd.f32 0.0, %v159
    %161 = vdwg.mxu0
    %v162 = vmul.f32 %v77, %v122
    %v163 = vmul.f32 %v80, %v125
    %v164 = vmul.f32 %v83, %v128
    %v165 = vmul.f32 %v86, %v131
    %v166 = vadd.f32 %v162, %v163
    %v167 = vadd.f32 %v166, %v164
    %v168 = vadd.f32 %v167, %v165
    %v169 = vrot.slane %v168, 4
    %v170 = vadd.f32 %v168, %v169
    %v171 = vrot.slane %v170, 2
    %v172 = vadd.f32 %v170, %v171
    %v173 = vrot.slane %v172, 1
    %v174 = vadd.f32 %v172, %v173
    %175 = vst [vmem:[#allocation2] sm:$0x1] %v174
    %v176 = vmul.f32 %v77, %v151
    %v177 = vmul.f32 %v80, %v154
    %v178 = vmul.f32 %v83, %v157
    %v179 = vmul.f32 %v86, %v160
    %v180 = vadd.f32 %v176, %v177
    %v181 = vadd.f32 %v180, %v178
    %v182 = vadd.f32 %v181, %v179
    %v183 = vrot.slane %v182, 4
    %v184 = vadd.f32 %v182, %v183
    %v185 = vrot.slane %v184, 2
    %v186 = vadd.f32 %v184, %v185
    %v187 = vrot.slane %v186, 1
    %v188 = vadd.f32 %v186, %v187
    %189 = vst [vmem:[#allocation2 + $0x1] sm:$0x1] %v188
    // Predicated region
    $region14: #{tpu_custom_call.1} parent=1 // pred_check
      _
    $region15: #{tpu_custom_call.1} parent=1 // pred_check_branch
      %191 = sbr.rel (0) target = $region17
    $region16: #{tpu_custom_call.1} parent=1 // pred_region
      %193 = vsyncadd [#allocation3], 0
      %s195 = sshll.u32 [#allocation2], 4
      %s196 = int_to_ptr.vmem [resolvable:$true] %s195
      %s197 = sshll.u32 %s3, 4
      %s198 = int_to_ptr.hbm [resolvable:$true] %s197
      %200 = dma.vmem_to_hbm [thread:$0]  %s196, 32, %s198, [#allocation3]
    $region17: #{tpu_custom_call.1} parent=1 // pred_fallthru
      _
    // Predicated region
    $region18: #{tpu_custom_call.1} parent=1 // pred_check
      _
    $region19: #{tpu_custom_call.1} parent=1 // pred_check_branch
      %202 = sbr.rel (0) target = $region21
    $region20: #{tpu_custom_call.1} parent=1 // pred_region
      %204 = dma.done [#allocation3], 32
    $region21: #{tpu_custom_call.1} parent=1 // pred_fallthru
      _
    %205 = vsyncpa [#allocation3], 1

</llo_original>
